<compile_context>
chip_gen: v7x
topology: tpu7x:2x2x1
jax: 0.10.0
libtpu: 0.0.40
codegen_flags: <defaults>
</compile_context>

<pallas_src>
import functools

import jax
import jax.numpy as jnp
from jax import lax
from jax.experimental import pallas as pl
from jax.experimental.pallas import tpu as pltpu


# ----------------------------------------------------------------------------- utils

def _vmem_capacity_bytes():
    """Physical VMEM of the local TPU generation (conservative fallback)."""
    try:
        cap = getattr(pltpu.get_tpu_info(), "vmem_capacity_bytes", None)
        if cap:
            return int(cap)
    except Exception:
        pass
    return 64 * 1024 * 1024  # v7x-sized fallback: safe on every generation


def _vmem_limit(est_bytes, vmem_cap):
    ceiling = (vmem_cap * 3) // 4          # 48 MiB on v7x, 96 MiB on v5e/v6e
    return int(min(max(2 * est_bytes, 32 * 1024 * 1024), ceiling))


def _softmax_lastdim(s):
    m = jnp.max(s, axis=-1, keepdims=True)
    e = jnp.exp(s - m)
    denom = jnp.sum(e, axis=-1, keepdims=True)
    return e * pl.reciprocal(denom, approx=True)   # EUP slot, effectively free


# ----------------------------------------------------------------------------- kernels

def _attn_kernel_o1(q_ref, c_ref, w_in_ref, b_in_ref, wm_ref, wq_ref, bo_ref,
                    *rest, return_weights):
    """O == 1 path: q_ref (bt, D), c_ref (bt, Q, D); batch-vectorised attention."""
    if return_weights:
        out_ref, wts_ref = rest
    else:
        (out_ref,) = rest
        wts_ref = None

    # linear_in folded over the whole batch slab: one dense MXU matmul.
    qt = jnp.dot(q_ref[...], w_in_ref[...],
                 preferred_element_type=jnp.float32) + b_in_ref[...]        # (bt, D)
    cf = c_ref[...].astype(jnp.float32)                                     # (bt, Q, D)

    # scores[b, q] = sum_d qt[b, d] * c[b, q, d]  -- one vectorised pass over the
    # whole block (VPU multiply + lane reduce); no per-batch loop.
    s = jnp.sum(qt[:, None, :] * cf, axis=-1)                               # (bt, Q)
    w = _softmax_lastdim(s)                                                 # (bt, Q)

    if wts_ref is not None:
        wts_ref[...] = w.astype(wts_ref.dtype)        # single dense (bt, Q) store

    # mix[b, d] = sum_q w[b, q] * c[b, q, d]
    mix = jnp.sum(w[:, :, None] * cf, axis=1)                               # (bt, D)

    # linear_out(concat(mix, qt)) = mix @ W_mix + qt @ W_q + b_out, folded over bt.
    lin = (jnp.dot(mix.astype(wm_ref.dtype), wm_ref[...],
                   preferred_element_type=jnp.float32)
           + jnp.dot(qt.astype(wq_ref.dtype), wq_ref[...],
                     preferred_element_type=jnp.float32)
           + bo_ref[...])
    out_ref[...] = jnp.tanh(lin).astype(out_ref.dtype)


def _attn_kernel_seq(q_ref, c_ref, w_in_ref, b_in_ref, wm_ref, wq_ref, bo_ref,
                     *rest, return_weights):
    """O > 1 path: q_ref (1, to, D), c_ref (1, Q, D); dense 2-D MXU matmuls."""
    if return_weights:
        out_ref, wts_ref = rest
    else:
        (out_ref,) = rest
        wts_ref = None

    qt = jnp.dot(q_ref[0], w_in_ref[...],
                 preferred_element_type=jnp.float32) + b_in_ref[...]        # (to, D)
    cf = c_ref[0].astype(jnp.float32)                                       # (Q, D)

    # scores contract on D of both operands -- no context transpose materialised.
    s = lax.dot_general(qt, cf, (((1,), (1,)), ((), ())),
                        preferred_element_type=jnp.float32)                 # (to, Q)
    w = _softmax_lastdim(s)

    if wts_ref is not None:
        wts_ref[0] = w.astype(wts_ref.dtype)          # single dense (to, Q) store

    mix = jnp.dot(w, cf, preferred_element_type=jnp.float32)                # (to, D)

    lin = (jnp.dot(mix.astype(wm_ref.dtype), wm_ref[...],
                   preferred_element_type=jnp.float32)
           + jnp.dot(qt.astype(wq_ref.dtype), wq_ref[...],
                     preferred_element_type=jnp.float32)
           + bo_ref[...])
    out_ref[0] = jnp.tanh(lin).astype(out_ref.dtype)


# ----------------------------------------------------------------------------- wrappers

def _attention_o1(query, context, w_in_t, b_in2, w_mix, w_q, b_out2, *,
                  block_b, return_weights, wdt):
    B, _, D = query.shape                  # O == 1
    Q = context.shape[1]
    dt = query.dtype
    itemsize = jnp.dtype(dt).itemsize
    wbytes = jnp.dtype(wdt).itemsize

    # Pad the batch to a multiple of 8: row blocks stay sublane-aligned without ever
    # collapsing an odd batch into one giant resident block.
    Bp = B if B % 8 == 0 else ((B + 7) // 8) * 8
    q2d = query.reshape(B, D)
    ctx = context
    if Bp != B:
        q2d = jnp.pad(q2d, ((0, Bp - B), (0, 0)))
        ctx = jnp.pad(context, ((0, Bp - B), (0, 0), (0, 0)))

    vmem_cap = _vmem_capacity_bytes()
    budget = vmem_cap // 2
    const_bytes = 2 * (3 * D * D + 2 * D) * itemsize            # double-buffered weights
    per_row = (2 * Q * D * itemsize                             # context block (x2 buffers)
               + 3 * Q * D * 4                                  # f32 cast + broadcast temps
               + 4 * D * itemsize + 3 * D * 4                   # q/out rows, qt/mix/lin
               + (2 * Q * wbytes if return_weights else 0) + 2 * Q * 4)
    mem_rows = max(8, (budget - const_bytes) // max(per_row, 1))
    row_target = 256 if vmem_cap > 96 * 1024 * 1024 else 128    # bigger slabs on v5e/v6e
    cap = min(mem_rows, row_target)

    if block_b is not None:
        bt = int(block_b)
        if Bp % bt or (bt % 8 and bt != Bp):
            raise ValueError(
                f"block_b={block_b} must divide the padded batch {Bp} and be a "
                f"multiple of 8 (or equal to it)")
    else:
        cands = [d for d in range(8, Bp + 1, 8) if Bp % d == 0]
        under = [d for d in cands if d <= cap]
        if under:
            multi = [d for d in under if Bp // d >= 2]  # keep >=2 steps: dual-TC + pipeline
            bt = max(multi) if multi else max(under)
        else:
            bt = min(cands)

    grid = (Bp // bt,)
    est = const_bytes + bt * per_row

    row_idx = lambda i: (i, 0)
    const2 = lambda i: (0, 0)
    in_specs = [
        pl.BlockSpec((bt, D), row_idx),                         # query rows (lane dense)
        pl.BlockSpec((bt, Q, D), lambda i: (i, 0, 0)),          # per-batch context
        pl.BlockSpec((D, D), const2),                           # W_in^T
        pl.BlockSpec((1, D), const2),                           # b_in
        pl.BlockSpec((D, D), const2),                           # W_out (mix half)
        pl.BlockSpec((D, D), const2),                           # W_out (query half)
        pl.BlockSpec((1, D), const2),                           # b_out
    ]
    if return_weights:
        out_shape = (jax.ShapeDtypeStruct((Bp, D), dt),
                     jax.ShapeDtypeStruct((Bp, Q), wdt))
        out_specs = [pl.BlockSpec((bt, D), row_idx),
                     pl.BlockSpec((bt, Q), row_idx)]
    else:
        out_shape = jax.ShapeDtypeStruct((Bp, D), dt)
        out_specs = pl.BlockSpec((bt, D), row_idx)

    grid_spec = pltpu.PrefetchScalarGridSpec(
        num_scalar_prefetch=0, grid=grid,
        in_specs=in_specs, out_specs=out_specs)

    result = pl.pallas_call(
        functools.partial(_attn_kernel_o1, return_weights=return_weights),
        out_shape=out_shape,
        grid_spec=grid_spec,
        compiler_params=pltpu.CompilerParams(
            dimension_semantics=("parallel",),
            vmem_limit_bytes=_vmem_limit(est, vmem_cap)),
    )(q2d, ctx, w_in_t, b_in2, w_mix, w_q, b_out2)

    if return_weights:
        out2d, wts2d = result
        return out2d[:B].reshape(B, 1, D), wts2d[:B].reshape(B, 1, Q)
    return result[:B].reshape(B, 1, D)


def _attention_seq(query, context, w_in_t, b_in2, w_mix, w_q, b_out2, *,
                   block_o, return_weights, wdt):
    B, O, D = query.shape
    Q = context.shape[1]
    dt = query.dtype
    itemsize = jnp.dtype(dt).itemsize
    wbytes = jnp.dtype(wdt).itemsize

    vmem_cap = _vmem_capacity_bytes()
    budget = vmem_cap // 2
    const_bytes = (2 * (3 * D * D + 2 * D) * itemsize           # weights (x2 buffers)
                   + 2 * Q * D * itemsize + Q * D * 4)          # context block + f32 cast
    per_row = (4 * D * itemsize + (3 * D + 2 * Q) * 4
               + (2 * Q * wbytes if return_weights else 0))
    mem_rows = max(1, (budget - const_bytes) // max(per_row, 1))
    row_target = 256 if vmem_cap > 96 * 1024 * 1024 else 128
    cap = min(mem_rows, row_target)

    if block_o is not None:
        to = int(block_o)
        if O % to or (to % 8 and to != O):
            raise ValueError(
                f"block_o={block_o} must divide output_len {O} and be a multiple of 8 "
                f"(or equal to it)")
    else:
        cands = [d for d in range(1, O + 1) if O % d == 0 and (d % 8 == 0 or d == O)]
        under = [d for d in cands if d <= cap]
        to = max(under) if under else min(cands)

    grid = (B, O // to)
    est = const_bytes + to * per_row

    const2 = lambda b, j: (0, 0)
    in_specs = [
        pl.BlockSpec((1, to, D), lambda b, j: (b, j, 0)),       # query rows
        pl.BlockSpec((1, Q, D), lambda b, j: (b, 0, 0)),        # this batch's context
        pl.BlockSpec((D, D), const2),                           # W_in^T
        pl.BlockSpec((1, D), const2),                           # b_in
        pl.BlockSpec((D, D), const2),                           # W_out (mix half)
        pl.BlockSpec((D, D), const2),                           # W_out (query half)
        pl.BlockSpec((1, D), const2),                           # b_out
    ]
    if return_weights:
        out_shape = (jax.ShapeDtypeStruct((B, O, D), dt),
                     jax.ShapeDtypeStruct((B, O, Q), wdt))
        out_specs = [pl.BlockSpec((1, to, D), lambda b, j: (b, j, 0)),
                     pl.BlockSpec((1, to, Q), lambda b, j: (b, j, 0))]
    else:
        out_shape = jax.ShapeDtypeStruct((B, O, D), dt)
        out_specs = pl.BlockSpec((1, to, D), lambda b, j: (b, j, 0))

    grid_spec = pltpu.PrefetchScalarGridSpec(
        num_scalar_prefetch=0, grid=grid,
        in_specs=in_specs, out_specs=out_specs)

    return pl.pallas_call(
        functools.partial(_attn_kernel_seq, return_weights=return_weights),
        out_shape=out_shape,
        grid_spec=grid_spec,
        compiler_params=pltpu.CompilerParams(
            dimension_semantics=("parallel", "parallel"),
            vmem_limit_bytes=_vmem_limit(est, vmem_cap)),
    )(query, context, w_in_t, b_in2, w_mix, w_q, b_out2)


def attention_general(query, context, w_in, b_in, w_out, b_out, *,
                      block_b=None, block_o=None, return_weights=True,
                      weights_dtype=None):
    """Pallas implementation of Attention(attention_type='general').forward.

    query  : (B, O, D)   context: (B, Q, D)
    w_in   : (D, D)  nn.Linear weight (out_features, in_features),  b_in: (D,)
    w_out  : (D, 2D) nn.Linear weight for linear_out,               b_out: (D,)
    Returns (output (B, O, D), weights (B, O, Q)) or just output if
    return_weights=False (skips the O*Q HBM write entirely).
    """
    B, O, D = query.shape
    if context.shape[0] != B or context.shape[2] != D:
        raise ValueError("context must be (B, Q, D) matching query's B and D")

    # Pre-transpose / split weights so the kernel does plain (in, out) matmuls.
    w_in_t = jnp.transpose(w_in)            # (D, D)
    w_out_t = jnp.transpose(w_out)          # (2D, D)
    w_mix = w_out_t[:D, :]                  # acts on mix
    w_q = w_out_t[D:, :]                    # acts on transformed query
    b_in2 = b_in.reshape(1, D)
    b_out2 = b_out.reshape(1, D)
    wdt = jnp.dtype(weights_dtype) if weights_dtype is not None else query.dtype

    if O == 1:
        return _attention_o1(query, context, w_in_t, b_in2, w_mix, w_q, b_out2,
                             block_b=block_b, return_weights=return_weights, wdt=wdt)
    return _attention_seq(query, context, w_in_t, b_in2, w_mix, w_q, b_out2,
                          block_o=block_o, return_weights=return_weights, wdt=wdt)


def attention_general_ref(query, context, w_in, b_in, w_out, b_out):
    """Pure-JAX reference mirroring the PyTorch forward."""
    B, O, D = query.shape
    q = query.reshape(B * O, D) @ w_in.T + b_in
    q = q.reshape(B, O, D)
    scores = jnp.einsum('bod,bqd->boq', q, context)
    w = jax.nn.softmax(scores, axis=-1)
    mix = jnp.einsum('boq,bqd->bod', w, context)
    combined = jnp.concatenate([mix, q], axis=-1).reshape(B * O, 2 * D)
    out = jnp.tanh(combined @ w_out.T + b_out).reshape(B, O, D)
    return out, w


if __name__ == "__main__":
    B, O, Q, D = 2, 1, 8, 32

    key = jax.random.PRNGKey(0)
    kq, kc, kw1, kb1, kw2, kb2 = jax.random.split(key, 6)

    query = jax.random.normal(kq, (B, O, D), dtype=jnp.float32)
    context = jax.random.normal(kc, (B, Q, D), dtype=jnp.float32)

    bound_in = 1.0 / (D ** 0.5)
    w_in = jax.random.uniform(kw1, (D, D), minval=-bound_in, maxval=bound_in,
                              dtype=jnp.float32)
    b_in = jax.random.uniform(kb1, (D,), minval=-bound_in, maxval=bound_in,
                              dtype=jnp.float32)
    bound_out = 1.0 / ((2 * D) ** 0.5)
    w_out = jax.random.uniform(kw2, (D, 2 * D), minval=-bound_out, maxval=bound_out,
                               dtype=jnp.float32)
    b_out = jax.random.uniform(kb2, (D,), minval=-bound_out, maxval=bound_out,
                               dtype=jnp.float32)

    # Tolerance loosened vs f32-exact because softmax uses the approx EUP reciprocal.
    TOL = dict(atol=2e-3, rtol=2e-3)

    # O == 1 path (canonical decoder attention; batch-vectorised kernel).
    out, wts = attention_general(query, context, w_in, b_in, w_out, b_out)
    out, wts = jax.block_until_ready((out, wts))
    out_ref, wts_ref = attention_general_ref(query, context, w_in, b_in, w_out, b_out)
    assert out.shape == (B, O, D) and wts.shape == (B, O, Q)
    assert jnp.allclose(out, out_ref, **TOL)
    assert jnp.allclose(wts, wts_ref, **TOL)

    # Output-only path (skips the O x Q attention-weights HBM write).
    out_only = attention_general(query, context, w_in, b_in, w_out, b_out,
                                 return_weights=False)
    out_only = jax.block_until_ready(out_only)
    assert jnp.allclose(out_only, out_ref, **TOL)

    # Larger batch: the auto-tiler folds 8 batches per step -> 2-step parallel grid.
    B2 = 16
    q2 = jax.random.normal(kq, (B2, O, D), dtype=jnp.float32)
    c2 = jax.random.normal(kc, (B2, Q, D), dtype=jnp.float32)
    out2, wts2 = attention_general(q2, c2, w_in, b_in, w_out, b_out)
    out2, wts2 = jax.block_until_ready((out2, wts2))
    out2_ref, wts2_ref = attention_general_ref(q2, c2, w_in, b_in, w_out, b_out)
    assert jnp.allclose(out2, out2_ref, **TOL)
    assert jnp.allclose(wts2, wts2_ref, **TOL)

    # O > 1 path (dense 2-D matmuls, one batch per grid step).
    O3 = 8
    q3 = jax.random.normal(kq, (B, O3, D), dtype=jnp.float32)
    out3, wts3 = attention_general(q3, context, w_in, b_in, w_out, b_out)
    out3, wts3 = jax.block_until_ready((out3, wts3))
    out3_ref, wts3_ref = attention_general_ref(q3, context, w_in, b_in, w_out, b_out)
    assert jnp.allclose(out3, out3_ref, **TOL)
    assert jnp.allclose(wts3, wts3_ref, **TOL)

    # TODO(synk): 'dot' and 'add' attention variants are not implemented; 'general'
    # (the module default) is the path exercised here.
    print("KERNEL_OK")
</pallas_src>

<mosaic_0001>
module attributes {stable_mosaic.version = 11 : i64} {
  func.func @_attn_kernel_o1(%arg0: i32, %arg1: memref<8x32xf32, #tpu.memory_space<vmem>>, %arg2: memref<8x8x32xf32, #tpu.memory_space<vmem>>, %arg3: memref<32x32xf32, #tpu.memory_space<vmem>>, %arg4: memref<1x32xf32, #tpu.memory_space<vmem>>, %arg5: memref<32x32xf32, #tpu.memory_space<vmem>>, %arg6: memref<32x32xf32, #tpu.memory_space<vmem>>, %arg7: memref<1x32xf32, #tpu.memory_space<vmem>>, %arg8: memref<8x32xf32, #tpu.memory_space<vmem>>, %arg9: memref<8x8xf32, #tpu.memory_space<vmem>>) attributes {dimension_semantics = [#tpu.dimension_semantics<parallel>], iteration_bounds = array<i64: 1>, scalar_prefetch = 0 : i64, scratch_operands = 0 : i64, tpu.core_type = #tpu.core_type<tc>, window_params = [{transform_indices = @transform_0, window_bounds = array<i64: 8, 32>}, {transform_indices = @transform_1, window_bounds = array<i64: 8, 8, 32>}, {pipeline_mode = #tpu.pipeline_mode<synchronous>, transform_indices = @transform_2, window_bounds = array<i64: 32, 32>}, {pipeline_mode = #tpu.pipeline_mode<synchronous>, transform_indices = @transform_3, window_bounds = array<i64: 1, 32>}, {pipeline_mode = #tpu.pipeline_mode<synchronous>, transform_indices = @transform_4, window_bounds = array<i64: 32, 32>}, {pipeline_mode = #tpu.pipeline_mode<synchronous>, transform_indices = @transform_5, window_bounds = array<i64: 32, 32>}, {pipeline_mode = #tpu.pipeline_mode<synchronous>, transform_indices = @transform_6, window_bounds = array<i64: 1, 32>}, {transform_indices = @transform_7, window_bounds = array<i64: 8, 32>}, {transform_indices = @transform_8, window_bounds = array<i64: 8, 8>}]} {
    %c0 = arith.constant 0 : index
    %c0_0 = arith.constant 0 : index
    %0 = vector.load %arg1[%c0, %c0_0] : memref<8x32xf32, #tpu.memory_space<vmem>>, vector<8x32xf32>
    %c0_1 = arith.constant 0 : index
    %c0_2 = arith.constant 0 : index
    %1 = vector.load %arg3[%c0_1, %c0_2] : memref<32x32xf32, #tpu.memory_space<vmem>>, vector<32x32xf32>
    %cst = arith.constant dense<0.000000e+00> : vector<8x32xf32>
    %2 = tpu.matmul %0, %1, %cst {dimension_numbers = #tpu.dot_dimension_numbers<[1], [0], [0], [1], [0, 0, 1, 1], [], []>} : vector<8x32xf32>, vector<32x32xf32>, vector<8x32xf32> -> vector<8x32xf32>
    %c0_3 = arith.constant 0 : index
    %c0_4 = arith.constant 0 : index
    %3 = vector.load %arg4[%c0_3, %c0_4] : memref<1x32xf32, #tpu.memory_space<vmem>>, vector<1x32xf32>
    %4 = vector.broadcast %3 : vector<1x32xf32> to vector<8x32xf32>
    %5 = arith.addf %2, %4 : vector<8x32xf32>
    %c0_5 = arith.constant 0 : index
    %c0_6 = arith.constant 0 : index
    %c0_7 = arith.constant 0 : index
    %6 = vector.load %arg2[%c0_5, %c0_6, %c0_7] : memref<8x8x32xf32, #tpu.memory_space<vmem>>, vector<8x8x32xf32>
    %7 = vector.shape_cast %5 : vector<8x32xf32> to vector<8x1x32xf32>
    %8 = vector.broadcast %7 : vector<8x1x32xf32> to vector<8x8x32xf32>
    %9 = arith.mulf %8, %6 : vector<8x8x32xf32>
    %cst_8 = arith.constant dense<0.000000e+00> : vector<8x8xf32>
    %10 = vector.multi_reduction <add>, %9, %cst_8 [2] : vector<8x8x32xf32> to vector<8x8xf32>
    %cst_9 = arith.constant dense<0xFF800000> : vector<8xf32>
    %11 = vector.multi_reduction <maximumf>, %10, %cst_9 [1] : vector<8x8xf32> to vector<8xf32>
    %12 = vector.shape_cast %11 : vector<8xf32> to vector<8x1xf32>
    %13 = vector.broadcast %12 : vector<8x1xf32> to vector<8x8xf32>
    %14 = arith.subf %10, %13 : vector<8x8xf32>
    %15 = math.exp %14 : vector<8x8xf32>
    %cst_10 = arith.constant dense<0.000000e+00> : vector<8xf32>
    %16 = vector.multi_reduction <add>, %15, %cst_10 [1] : vector<8x8xf32> to vector<8xf32>
    %17 = vector.shape_cast %16 : vector<8xf32> to vector<8x1xf32>
    %18 = tpu.reciprocal %17 {approx = true} : vector<8x1xf32> -> vector<8x1xf32>
    %19 = vector.broadcast %18 : vector<8x1xf32> to vector<8x8xf32>
    %20 = arith.mulf %15, %19 : vector<8x8xf32>
    %c0_11 = arith.constant 0 : index
    %c0_12 = arith.constant 0 : index
    %21 = vector.load %arg9[%c0_11, %c0_12] : memref<8x8xf32, #tpu.memory_space<vmem>>, vector<8x8xf32>
    tpu.vector_store %arg9[%c0_11, %c0_12], %20 {strides = array<i32>} : memref<8x8xf32, #tpu.memory_space<vmem>>, vector<8x8xf32>,
    %22 = vector.shape_cast %20 : vector<8x8xf32> to vector<8x8x1xf32>
    %23 = vector.broadcast %22 : vector<8x8x1xf32> to vector<8x8x32xf32>
    %24 = arith.mulf %23, %6 : vector<8x8x32xf32>
    %cst_13 = arith.constant dense<0.000000e+00> : vector<8x32xf32>
    %25 = vector.multi_reduction <add>, %24, %cst_13 [1] : vector<8x8x32xf32> to vector<8x32xf32>
    %c0_14 = arith.constant 0 : index
    %c0_15 = arith.constant 0 : index
    %26 = vector.load %arg5[%c0_14, %c0_15] : memref<32x32xf32, #tpu.memory_space<vmem>>, vector<32x32xf32>
    %cst_16 = arith.constant dense<0.000000e+00> : vector<8x32xf32>
    %27 = tpu.matmul %25, %26, %cst_16 {dimension_numbers = #tpu.dot_dimension_numbers<[1], [0], [0], [1], [0, 0, 1, 1], [], []>} : vector<8x32xf32>, vector<32x32xf32>, vector<8x32xf32> -> vector<8x32xf32>
    %c0_17 = arith.constant 0 : index
    %c0_18 = arith.constant 0 : index
    %28 = vector.load %arg6[%c0_17, %c0_18] : memref<32x32xf32, #tpu.memory_space<vmem>>, vector<32x32xf32>
    %cst_19 = arith.constant dense<0.000000e+00> : vector<8x32xf32>
    %29 = tpu.matmul %5, %28, %cst_19 {dimension_numbers = #tpu.dot_dimension_numbers<[1], [0], [0], [1], [0, 0, 1, 1], [], []>} : vector<8x32xf32>, vector<32x32xf32>, vector<8x32xf32> -> vector<8x32xf32>
    %30 = arith.addf %27, %29 : vector<8x32xf32>
    %c0_20 = arith.constant 0 : index
    %c0_21 = arith.constant 0 : index
    %31 = vector.load %arg7[%c0_20, %c0_21] : memref<1x32xf32, #tpu.memory_space<vmem>>, vector<1x32xf32>
    %32 = vector.broadcast %31 : vector<1x32xf32> to vector<8x32xf32>
    %33 = arith.addf %30, %32 : vector<8x32xf32>
    %34 = math.tanh %33 : vector<8x32xf32>
    %c0_22 = arith.constant 0 : index
    %c0_23 = arith.constant 0 : index
    %35 = vector.load %arg8[%c0_22, %c0_23] : memref<8x32xf32, #tpu.memory_space<vmem>>, vector<8x32xf32>
    tpu.vector_store %arg8[%c0_22, %c0_23], %34 {strides = array<i32>} : memref<8x32xf32, #tpu.memory_space<vmem>>, vector<8x32xf32>,
    return
  }
  func.func @transform_0(%arg0: i32) -> (i32, i32) {
    %c0_i32 = arith.constant 0 : i32
    %c0_i32_0 = arith.constant 0 : i32
    return %arg0, %c0_i32 : i32, i32
  }
  func.func @transform_1(%arg0: i32) -> (i32, i32, i32) {
    %c0_i32 = arith.constant 0 : i32
    %c0_i32_0 = arith.constant 0 : i32
    %c0_i32_1 = arith.constant 0 : i32
    return %arg0, %c0_i32, %c0_i32_0 : i32, i32, i32
  }
  func.func @transform_2(%arg0: i32) -> (i32, i32) {
    %c0_i32 = arith.constant 0 : i32
    %c0_i32_0 = arith.constant 0 : i32
    %c0_i32_1 = arith.constant 0 : i32
    return %c0_i32, %c0_i32_0 : i32, i32
  }
  func.func @transform_3(%arg0: i32) -> (i32, i32) {
    %c0_i32 = arith.constant 0 : i32
    %c0_i32_0 = arith.constant 0 : i32
    %c0_i32_1 = arith.constant 0 : i32
    return %c0_i32, %c0_i32_0 : i32, i32
  }
  func.func @transform_4(%arg0: i32) -> (i32, i32) {
    %c0_i32 = arith.constant 0 : i32
    %c0_i32_0 = arith.constant 0 : i32
    %c0_i32_1 = arith.constant 0 : i32
    return %c0_i32, %c0_i32_0 : i32, i32
  }
  func.func @transform_5(%arg0: i32) -> (i32, i32) {
    %c0_i32 = arith.constant 0 : i32
    %c0_i32_0 = arith.constant 0 : i32
    %c0_i32_1 = arith.constant 0 : i32
    return %c0_i32, %c0_i32_0 : i32, i32
  }
  func.func @transform_6(%arg0: i32) -> (i32, i32) {
    %c0_i32 = arith.constant 0 : i32
    %c0_i32_0 = arith.constant 0 : i32
    %c0_i32_1 = arith.constant 0 : i32
    return %c0_i32, %c0_i32_0 : i32, i32
  }
  func.func @transform_7(%arg0: i32) -> (i32, i32) {
    %c0_i32 = arith.constant 0 : i32
    %c0_i32_0 = arith.constant 0 : i32
    return %arg0, %c0_i32 : i32, i32
  }
  func.func @transform_8(%arg0: i32) -> (i32, i32) {
    %c0_i32 = arith.constant 0 : i32
    %c0_i32_0 = arith.constant 0 : i32
    return %arg0, %c0_i32 : i32, i32
  }
}

</mosaic_0001>

<llo_original>
// kernel: tpu_custom_call.1
$region0: #{tpu_custom_call.1}
  #allocation0 [shape = 'u32[]', space=smem, size = 0x4, offset = 0x4, fixed_abs, tag = 'smem constant byte address 0x4 - core index']
  #allocation1 [shape = 'u32[144,128]{1,0:T(1,128)}', space=vmem, size = 0x12000, scoped, tag = 'internal scratch']
  %s0 = inlined_call_operand.hbm [shape: f32[8,32], index: 0, kind: input, shape index: {}]
  %s1 = inlined_call_operand.hbm [shape: f32[8,8,32], index: 1, kind: input, shape index: {}]
  %s2 = inlined_call_operand.hbm [shape: f32[32,32], index: 2, kind: input, shape index: {}]
  %s3 = inlined_call_operand.vmem [shape: f32[1,32], index: 3, kind: input, shape index: {}]
  %s4 = inlined_call_operand.hbm [shape: f32[32,32], index: 4, kind: input, shape index: {}]
  %s5 = inlined_call_operand.hbm [shape: f32[32,32], index: 5, kind: input, shape index: {}]
  %s6 = inlined_call_operand.vmem [shape: f32[1,32], index: 6, kind: input, shape index: {}]
  %s7 = inlined_call_operand.hbm [shape: f32[8,32], index: 7, kind: output, shape index: {0}]
  %s8 = inlined_call_operand.hbm [shape: f32[8,8], index: 8, kind: output, shape index: {1}]
  %9 = xla_tuple %s7, %s8
  %s10 = sld [smem:[#allocation0]]
  $region66: #{tpu_custom_call.1} parent=0
    _
  %s12 = ssub.s32 1, %s10
  %s13 = scalar_select 0, %s12, %s10
  $region1: #{tpu_custom_call.1} parent=0
    #allocation2 [shape = 'u8[4096]{0}', space=vmem, size = 0x1000, scoped, tag = 'input window, operand 0, single buffered']
    #allocation3 [shape = 's32[1]{0}', space=sflag, size = 0x4, scoped, tag = 'scoped memory for tpu_custom_call.1']
    #allocation4 [shape = 's32[1]{0}', space=sflag, size = 0x4, scoped, tag = 'scoped memory for tpu_custom_call.1']
    #allocation5 [shape = 'u8[32768]{0}', space=vmem, size = 0x8000, scoped, tag = 'input window, operand 1, single buffered']
    #allocation6 [shape = 's32[1]{0}', space=sflag, size = 0x4, scoped, tag = 'scoped memory for tpu_custom_call.1']
    #allocation7 [shape = 'u8[16384]{0}', space=vmem, size = 0x4000, scoped, tag = 'input window, operand 2, single buffered']
    #allocation8 [shape = 'u8[16384]{0}', space=vmem, size = 0x4000, scoped, tag = 'input window, operand 4, single buffered']
    #allocation9 [shape = 's32[1]{0}', space=sflag, size = 0x4, scoped, tag = 'scoped memory for tpu_custom_call.1']
    #allocation10 [shape = 'u8[16384]{0}', space=vmem, size = 0x4000, scoped, tag = 'input window, operand 5, single buffered']
    #allocation11 [shape = 'u8[4096]{0}', space=vmem, size = 0x1000, scoped, tag = 'output window, operand 0, single buffered']
    #allocation12 [shape = 'u8[4096]{0}', space=vmem, size = 0x1000, scoped, tag = 'output window, operand 1, single buffered']
    #allocation13 [shape = 's32[1]{0}', space=sflag, size = 0x4, scoped, tag = 'scoped memory for tpu_custom_call.1']
    %14 = vsyncpa [#allocation3], 0
    %15 = vsyncpa [#allocation6], 0
    %16 = vsyncpa [#allocation9], 0
    %17 = vsyncpa [#allocation4], 0
    %18 = vsyncpa [#allocation13], 0
    // Predicated region
    $region2: #{tpu_custom_call.1} parent=1 // pred_check
      _
    $region3: #{tpu_custom_call.1} parent=1 // pred_check_branch
      %20 = sbr.rel (0) target = $region5
    $region4: #{tpu_custom_call.1} parent=1 // pred_region
      %s22 = ssub.s32 128, 128
      %23 = vsyncadd [#allocation3], %s22
      %s25 = sshll.u32 [#allocation2], 4
      %s26 = int_to_ptr.vmem [resolvable:$true] %s25
      %28 = dma.hbm_to_vmem [thread:$0]  %s0, 128, %s26, [#allocation3]
    $region5: #{tpu_custom_call.1} parent=1 // pred_fallthru
      _
    // Predicated region
    $region6: #{tpu_custom_call.1} parent=1 // pred_check
      _
    $region7: #{tpu_custom_call.1} parent=1 // pred_check_branch
      %30 = sbr.rel (0) target = $region9
    $region8: #{tpu_custom_call.1} parent=1 // pred_region
      %s32 = ssub.s32 1024, 1024
      %33 = vsyncadd [#allocation6], %s32
      %s34 = sshll.u32 [#allocation5], 4
      %s35 = int_to_ptr.vmem [resolvable:$true] %s34
      %40 = dma.hbm_to_vmem [thread:$0]  %s1, 1024, %s35, [#allocation6], 128, 128, 8
    $region9: #{tpu_custom_call.1} parent=1 // pred_fallthru
      _
    // Predicated region
    $region10: #{tpu_custom_call.1} parent=1 // pred_check
      _
    $region11: #{tpu_custom_call.1} parent=1 // pred_check_branch
      %42 = sbr.rel (0) target = $region13
    $region12: #{tpu_custom_call.1} parent=1 // pred_region
      %s44 = ssub.s32 512, 512
      %45 = vsyncadd [#allocation6], %s44
      %s46 = sshll.u32 [#allocation7], 4
      %s47 = int_to_ptr.vmem [resolvable:$true] %s46
      %52 = dma.hbm_to_vmem [thread:$0]  %s2, 512, %s47, [#allocation6], 128, 128, 8
    $region13: #{tpu_custom_call.1} parent=1 // pred_fallthru
      _
    // Predicated region
    $region14: #{tpu_custom_call.1} parent=1 // pred_check
      _
    $region15: #{tpu_custom_call.1} parent=1 // pred_check_branch
      %54 = sbr.rel (0) target = $region17
    $region16: #{tpu_custom_call.1} parent=1 // pred_region
      _
    $region17: #{tpu_custom_call.1} parent=1 // pred_fallthru
      _
    // Predicated region
    $region18: #{tpu_custom_call.1} parent=1 // pred_check
      _
    $region19: #{tpu_custom_call.1} parent=1 // pred_check_branch
      %56 = sbr.rel (0) target = $region21
    $region20: #{tpu_custom_call.1} parent=1 // pred_region
      %s58 = ssub.s32 512, 512
      %59 = vsyncadd [#allocation9], %s58
      %s60 = sshll.u32 [#allocation8], 4
      %s61 = int_to_ptr.vmem [resolvable:$true] %s60
      %66 = dma.hbm_to_vmem [thread:$0]  %s4, 512, %s61, [#allocation9], 128, 128, 8
    $region21: #{tpu_custom_call.1} parent=1 // pred_fallthru
      _
    // Predicated region
    $region22: #{tpu_custom_call.1} parent=1 // pred_check
      _
    $region23: #{tpu_custom_call.1} parent=1 // pred_check_branch
      %68 = sbr.rel (0) target = $region25
    $region24: #{tpu_custom_call.1} parent=1 // pred_region
      %s70 = ssub.s32 512, 512
      %71 = vsyncadd [#allocation9], %s70
      %s72 = sshll.u32 [#allocation10], 4
      %s73 = int_to_ptr.vmem [resolvable:$true] %s72
      %78 = dma.hbm_to_vmem [thread:$0]  %s5, 512, %s73, [#allocation9], 128, 128, 8
    $region25: #{tpu_custom_call.1} parent=1 // pred_fallthru
      _
    // Predicated region
    $region26: #{tpu_custom_call.1} parent=1 // pred_check
      _
    $region27: #{tpu_custom_call.1} parent=1 // pred_check_branch
      %80 = sbr.rel (0) target = $region29
    $region28: #{tpu_custom_call.1} parent=1 // pred_region
      _
    $region29: #{tpu_custom_call.1} parent=1 // pred_fallthru
      _
    // Predicated region
    $region30: #{tpu_custom_call.1} parent=1 // pred_check
      _
    $region31: #{tpu_custom_call.1} parent=1 // pred_check_branch
      %82 = sbr.rel (0) target = $region33
    $region32: #{tpu_custom_call.1} parent=1 // pred_region
      %83 = dma.done [#allocation3], 128
    $region33: #{tpu_custom_call.1} parent=1 // pred_fallthru
      _
    // Predicated region
    $region34: #{tpu_custom_call.1} parent=1 // pred_check
      _
    $region35: #{tpu_custom_call.1} parent=1 // pred_check_branch
      %85 = sbr.rel (0) target = $region37
    $region36: #{tpu_custom_call.1} parent=1 // pred_region
      %86 = dma.done [#allocation6], 1024
    $region37: #{tpu_custom_call.1} parent=1 // pred_fallthru
      _
    // Predicated region
    $region38: #{tpu_custom_call.1} parent=1 // pred_check
      _
    $region39: #{tpu_custom_call.1} parent=1 // pred_check_branch
      %88 = sbr.rel (0) target = $region41
    $region40: #{tpu_custom_call.1} parent=1 // pred_region
      %89 = dma.done [#allocation6], 512
    $region41: #{tpu_custom_call.1} parent=1 // pred_fallthru
      _
    // Predicated region
    $region42: #{tpu_custom_call.1} parent=1 // pred_check
      _
    $region43: #{tpu_custom_call.1} parent=1 // pred_check_branch
      %91 = sbr.rel (0) target = $region45
    $region44: #{tpu_custom_call.1} parent=1 // pred_region
      %92 = dma.done [#allocation9], 512
    $region45: #{tpu_custom_call.1} parent=1 // pred_fallthru
      _
    // Predicated region
    $region46: #{tpu_custom_call.1} parent=1 // pred_check
      _
    $region47: #{tpu_custom_call.1} parent=1 // pred_check_branch
      %94 = sbr.rel (0) target = $region49
    $region48: #{tpu_custom_call.1} parent=1 // pred_region
      %95 = dma.done [#allocation9], 512
    $region49: #{tpu_custom_call.1} parent=1 // pred_fallthru
      _
    %v96 = vld [vmem:[#allocation2] sm:$0xff]
    %v97 = vld [vmem:[#allocation7] sm:$0xff]
    %v98 = vld [vmem:[#allocation7 + $0x8] sm:$0xff]
    %v99 = vld [vmem:[#allocation7 + $0x10] sm:$0xff]
    %v100 = vld [vmem:[#allocation7 + $0x18] sm:$0xff]
    %v101 = vld [vmem:[%s3] sm:$0x1]
    %v103 = vlaneseq
    %v104 = vshrl.u32 %v103, 7
    %v105 = vsub.s32 0, %v104
    %v106 = vrot.slane %v101, %v105
    %vm108 = vcmask 261120
    %v110 = vsel %vm108, %v96, 0
    %112 = vmatprep.subr.mxu0 0.0
    %113 = vmatpush1.msra.mxu0 %v97
    %114 = vmatprep.subr.mxu0 0.0
    %115 = vmatpush1.msra.mxu0 %v98
    %116 = vmatprep.subr.mxu0 0.0
    %117 = vmatpush1.msra.mxu0 %v99
    %118 = vmatprep.subr.mxu0 0.0
    %119 = vmatpush1.msra.mxu0 %v100
    %120 = vmatprep.subr.mxu0 0.0
    %121 = vmatpush1.msra.mxu0 0.0
    %122 = vmatprep.subr.mxu0 0.0
    %123 = vmatpush1.msra.mxu0 0.0
    %124 = vmatprep.subr.mxu0 0.0
    %125 = vmatpush1.msra.mxu0 0.0
    %126 = vmatprep.subr.mxu0 0.0
    %127 = vmatpush1.msra.mxu0 0.0
    %128 = vmatprep.subr.mxu0 0.0
    %129 = vmatpush1.msra.mxu0 0.0
    %130 = vmatprep.subr.mxu0 0.0
    %131 = vmatpush1.msra.mxu0 0.0
    %132 = vmatprep.subr.mxu0 0.0
    %133 = vmatpush1.msra.mxu0 0.0
    %134 = vmatprep.subr.mxu0 0.0
    %135 = vmatpush1.msra.mxu0 0.0
    %136 = vmatprep.subr.mxu0 0.0
    %137 = vmatpush1.msra.mxu0 0.0
    %138 = vmatprep.subr.mxu0 0.0
    %139 = vmatpush1.msra.mxu0 0.0
    %140 = vmatprep.subr.mxu0 0.0
    %141 = vmatpush1.msra.mxu0 0.0
    %142 = vmatprep.subr.mxu0 0.0
    %143 = vmatpush1.msra.mxu0 0.0
    %144 = vmatprep.subr.mxu0 0.0
    %145 = vmatpush1.msra.mxu0 0.0
    %146 = vmatprep.subr.mxu0 0.0
    %147 = vmatpush1.msra.mxu0 0.0
    %148 = vmatprep.subr.mxu0 0.0
    %149 = vmatpush1.msra.mxu0 0.0
    %150 = vmatprep.subr.mxu0 0.0
    %151 = vmatpush1.msra.mxu0 0.0
    %152 = vmatprep.subr.mxu0 0.0
    %153 = vmatpush1.msra.mxu0 0.0
    %154 = vmatprep.subr.mxu0 0.0
    %155 = vmatpush1.msra.mxu0 0.0
    %156 = vmatprep.subr.mxu0 0.0
    %157 = vmatpush1.msra.mxu0 0.0
    %158 = vmatprep.subr.mxu0 0.0
    %159 = vmatpush1.msra.mxu0 0.0
    %160 = vmatprep.subr.mxu0 0.0
    %161 = vmatpush1.msra.mxu0 0.0
    %162 = vmatprep.subr.mxu0 0.0
    %163 = vmatpush1.msra.mxu0 0.0
    %164 = vmatprep.subr.mxu0 0.0
    %165 = vmatpush1.msra.mxu0 0.0
    %166 = vmatprep.subr.mxu0 0.0
    %167 = vmatpush1.msra.mxu0 0.0
    %168 = vmatprep.subr.mxu0 0.0
    %169 = vmatpush1.msra.mxu0 0.0
    %170 = vmatprep.subr.mxu0 0.0
    %171 = vmatpush1.msra.mxu0 0.0
    %172 = vmatprep.subr.mxu0 0.0
    %173 = vmatpush1.msra.mxu0 0.0
    %174 = vmatprep.subr.mxu0 0.0
    %175 = vmatpush1.msra.mxu0 0.0
    %176 = vmatprep.mubr.f32.mxu0 0.0
    %177 = vmatmul.mubr.f32.gmra.mrb[0].mxu0 %v110
    %v178 = vpop.f32.mrb[0].mxu0
    %v179 = vadd.f32 %v106, %v178
    %v180 = vpop.f32.mrb[0].mxu0
    %181 = vdwg.mxu0
    %v182 = vld [vmem:[#allocation5] sm:$0xff]
    %v183 = vld [vmem:[#allocation5 + $0x8] sm:$0xff]
    %v184 = vld [vmem:[#allocation5 + $0x10] sm:$0xff]
    %v185 = vld [vmem:[#allocation5 + $0x18] sm:$0xff]
    %v186 = vld [vmem:[#allocation5 + $0x20] sm:$0xff]
    %v187 = vld [vmem:[#allocation5 + $0x28] sm:$0xff]
    %v188 = vld [vmem:[#allocation5 + $0x30] sm:$0xff]
    %v189 = vld [vmem:[#allocation5 + $0x38] sm:$0xff]
    %v191 = vcombine.high %v179, %v179
    %v193 = vunpack.c.l.s4 1966171168
    %v194 = vunpack.c.0.s8 %v193
    %v195 = vlaneseq
    %v196 = vshrl.u32 %v195, 7
    %v197 = vsub.s32 %v194, %v196
    %v198 = vrot.slane %v179, %v197
    %v200 = vunpack.c.l.s4 1966171168
    %v201 = vunpack.c.0.s8 %v200
    %v202 = vlaneseq
    %v203 = vshrl.u32 %v202, 7
    %v204 = vsub.s32 %v201, %v203
    %v205 = vrot.slane %v191, %v204
    %v206 = vcombine.high %v198, %v198
    %v207 = vcombine.high %v205, %v205
    %v209 = vunpack.c.l.s4 1966171168
    %v210 = vunpack.c.0.s8 %v209
    %v211 = vlaneseq
    %v212 = vshrl.u32 %v211, 7
    %v213 = vsub.s32 %v210, %v212
    %v214 = vrot.slane %v198, %v213
    %v216 = vunpack.c.l.s4 1966171168
    %v217 = vunpack.c.0.s8 %v216
    %v218 = vlaneseq
    %v219 = vshrl.u32 %v218, 7
    %v220 = vsub.s32 %v217, %v219
    %v221 = vrot.slane %v205, %v220
    %v223 = vunpack.c.l.s4 1966171168
    %v224 = vunpack.c.0.s8 %v223
    %v225 = vlaneseq
    %v226 = vshrl.u32 %v225, 7
    %v227 = vsub.s32 %v224, %v226
    %v228 = vrot.slane %v206, %v227
    %v230 = vunpack.c.l.s4 1966171168
    %v231 = vunpack.c.0.s8 %v230
    %v232 = vlaneseq
    %v233 = vshrl.u32 %v232, 7
    %v234 = vsub.s32 %v231, %v233
    %v235 = vrot.slane %v207, %v234
    %v236 = vcombine.high %v214, %v214
    %v237 = vcombine.high %v221, %v221
    %v238 = vcombine.high %v228, %v228
    %v239 = vcombine.high %v235, %v235
    %v240 = vlaneseq
    %v241 = vshrl.u32 %v240, 7
    %v242 = vsub.s32 0, %v241
    %v243 = vrot.slane %v214, %v242
    %v244 = vlaneseq
    %v245 = vshrl.u32 %v244, 7
    %v246 = vsub.s32 0, %v245
    %v247 = vrot.slane %v228, %v246
    %v248 = vlaneseq
    %v249 = vshrl.u32 %v248, 7
    %v250 = vsub.s32 0, %v249
    %v251 = vrot.slane %v236, %v250
    %v252 = vlaneseq
    %v253 = vshrl.u32 %v252, 7
    %v254 = vsub.s32 0, %v253
    %v255 = vrot.slane %v238, %v254
    %v256 = vlaneseq
    %v257 = vshrl.u32 %v256, 7
    %v258 = vsub.s32 0, %v257
    %v259 = vrot.slane %v221, %v258
    %v260 = vlaneseq
    %v261 = vshrl.u32 %v260, 7
    %v262 = vsub.s32 0, %v261
    %v263 = vrot.slane %v235, %v262
    %v264 = vlaneseq
    %v265 = vshrl.u32 %v264, 7
    %v266 = vsub.s32 0, %v265
    %v267 = vrot.slane %v237, %v266
    %v268 = vlaneseq
    %v269 = vshrl.u32 %v268, 7
    %v270 = vsub.s32 0, %v269
    %v271 = vrot.slane %v239, %v270
    %v280 = vmul.f32 %v243, %v182
    %v281 = vmul.f32 %v247, %v183
    %v282 = vmul.f32 %v251, %v184
    %v283 = vmul.f32 %v255, %v185
    %v284 = vmul.f32 %v259, %v186
    %v285 = vmul.f32 %v263, %v187
    %v286 = vmul.f32 %v267, %v188
    %v287 = vmul.f32 %v271, %v189
    %v288 = vsel %vm108, %v280, 0.0
    %289 = vadd.xlane.f32.xlu0 %v288
    %v290 = vpop.xlane.xlu0 %289
    %v291 = vsel %vm108, %v281, 0.0
    %292 = vadd.xlane.f32.xlu0 %v291
    %v293 = vpop.xlane.xlu0 %292
    %v294 = vsel %vm108, %v282, 0.0
    %295 = vadd.xlane.f32.xlu0 %v294
    %v296 = vpop.xlane.xlu0 %295
    %v297 = vsel %vm108, %v283, 0.0
    %298 = vadd.xlane.f32.xlu0 %v297
    %v299 = vpop.xlane.xlu0 %298
    %v300 = vsel %vm108, %v284, 0.0
    %301 = vadd.xlane.f32.xlu0 %v300
    %v302 = vpop.xlane.xlu0 %301
    %v303 = vsel %vm108, %v285, 0.0
    %304 = vadd.xlane.f32.xlu0 %v303
    %v305 = vpop.xlane.xlu0 %304
    %v306 = vsel %vm108, %v286, 0.0
    %307 = vadd.xlane.f32.xlu0 %v306
    %v308 = vpop.xlane.xlu0 %307
    %v309 = vsel %vm108, %v287, 0.0
    %310 = vadd.xlane.f32.xlu0 %v309
    %v311 = vpop.xlane.xlu0 %310
    %v320 = vlaneseq
    %v321 = vand.u32 %v320, 127
    %v322 = vlaneseq
    %v323 = vshrl.u32 %v322, 7
    %v324 = vsub.s32 %v321, %v323
    %v325 = vrot.slane %v290, %v324
    %v326 = vlaneseq
    %v327 = vshrl.u32 %v326, 7
    %v328 = vsub.s32 %v321, %v327
    %v329 = vrot.slane %v293, %v328
    %v330 = vlaneseq
    %v331 = vshrl.u32 %v330, 7
    %v332 = vsub.s32 %v321, %v331
    %v333 = vrot.slane %v296, %v332
    %v334 = vlaneseq
    %v335 = vshrl.u32 %v334, 7
    %v336 = vsub.s32 %v321, %v335
    %v337 = vrot.slane %v299, %v336
    %v338 = vlaneseq
    %v339 = vshrl.u32 %v338, 7
    %v340 = vsub.s32 %v321, %v339
    %v341 = vrot.slane %v302, %v340
    %v342 = vlaneseq
    %v343 = vshrl.u32 %v342, 7
    %v344 = vsub.s32 %v321, %v343
    %v345 = vrot.slane %v305, %v344
    %v346 = vlaneseq
    %v347 = vshrl.u32 %v346, 7
    %v348 = vsub.s32 %v321, %v347
    %v349 = vrot.slane %v308, %v348
    %v350 = vlaneseq
    %v351 = vshrl.u32 %v350, 7
    %v352 = vsub.s32 %v321, %v351
    %v353 = vrot.slane %v311, %v352
    %vm354 = vcmask 1041409
    %v355 = vsel %vm354, %v329, %v325
    %vm356 = vcmask 1042434
    %v357 = vsel %vm356, %v333, %v355
    %vm358 = vcmask 1043459
    %v359 = vsel %vm358, %v337, %v357
    %vm360 = vcmask 1044484
    %v361 = vsel %vm360, %v341, %v359
    %vm362 = vcmask 1045509
    %v363 = vsel %vm362, %v345, %v361
    %vm364 = vcmask 1046534
    %v365 = vsel %vm364, %v349, %v363
    %vm366 = vcmask 1047559
    %v367 = vsel %vm366, %v353, %v365
    %vm369 = vcmask 64512
    %v370 = vsel %vm369, %v367, -inf
    %371 = vmax.xlane.f32.xlu0 %v370
    %v372 = vpop.xlane.xlu0 %371
    %v374 = vlaneseq
    %v375 = vshrl.u32 %v374, 7
    %v376 = vsub.s32 0, %v375
    %v377 = vrot.slane %v372, %v376
    %v378 = vlaneseq
    %v379 = vshrl.u32 %v378, 7
    %v380 = vsub.s32 1, %v379
    %v381 = vrot.slane %v372, %v380
    %v382 = vlaneseq
    %v383 = vshrl.u32 %v382, 7
    %v384 = vsub.s32 2, %v383
    %v385 = vrot.slane %v372, %v384
    %v386 = vlaneseq
    %v387 = vshrl.u32 %v386, 7
    %v388 = vsub.s32 3, %v387
    %v389 = vrot.slane %v372, %v388
    %v390 = vlaneseq
    %v391 = vshrl.u32 %v390, 7
    %v392 = vsub.s32 4, %v391
    %v393 = vrot.slane %v372, %v392
    %v394 = vlaneseq
    %v395 = vshrl.u32 %v394, 7
    %v396 = vsub.s32 5, %v395
    %v397 = vrot.slane %v372, %v396
    %v398 = vlaneseq
    %v399 = vshrl.u32 %v398, 7
    %v400 = vsub.s32 6, %v399
    %v401 = vrot.slane %v372, %v400
    %v402 = vlaneseq
    %v403 = vshrl.u32 %v402, 7
    %v404 = vsub.s32 7, %v403
    %v405 = vrot.slane %v372, %v404
    %v414 = vsub.f32 %v290, %v377
    %v415 = vsub.f32 %v293, %v381
    %v416 = vsub.f32 %v296, %v385
    %v417 = vsub.f32 %v299, %v389
    %v418 = vsub.f32 %v302, %v393
    %v419 = vsub.f32 %v305, %v397
    %v420 = vsub.f32 %v308, %v401
    %v421 = vsub.f32 %v311, %v405
    %v422 = vmul.f32 %v414, 1.442695
    %v423 = vpow.pop %v422
    %v424 = vmul.f32 %v415, 1.442695
    %v425 = vpow.pop %v424
    %v426 = vmul.f32 %v416, 1.442695
    %v427 = vpow.pop %v426
    %v428 = vmul.f32 %v417, 1.442695
    %v429 = vpow.pop %v428
    %v430 = vmul.f32 %v418, 1.442695
    %v431 = vpow.pop %v430
    %v432 = vmul.f32 %v419, 1.442695
    %v433 = vpow.pop %v432
    %v434 = vmul.f32 %v420, 1.442695
    %v435 = vpow.pop %v434
    %v436 = vmul.f32 %v421, 1.442695
    %v437 = vpow.pop %v436
    %446 = vset.pattern.permute.xlu0 0
    %447 = vperm.xlu0 %446, %v423
    %v448 = vpop.permute.xlu0 %447
    %449 = vset.pattern.permute.xlu0 0
    %450 = vperm.xlu0 %449, %v425
    %v451 = vpop.permute.xlu0 %450
    %452 = vset.pattern.permute.xlu0 0
    %453 = vperm.xlu0 %452, %v427
    %v454 = vpop.permute.xlu0 %453
    %455 = vset.pattern.permute.xlu0 0
    %456 = vperm.xlu0 %455, %v429
    %v457 = vpop.permute.xlu0 %456
    %458 = vset.pattern.permute.xlu0 0
    %459 = vperm.xlu0 %458, %v431
    %v460 = vpop.permute.xlu0 %459
    %461 = vset.pattern.permute.xlu0 0
    %462 = vperm.xlu0 %461, %v433
    %v463 = vpop.permute.xlu0 %462
    %464 = vset.pattern.permute.xlu0 0
    %465 = vperm.xlu0 %464, %v435
    %v466 = vpop.permute.xlu0 %465
    %467 = vset.pattern.permute.xlu0 0
    %468 = vperm.xlu0 %467, %v437
    %v469 = vpop.permute.xlu0 %468
    %v470 = vlaneseq
    %v471 = vshrl.u32 %v470, 7
    %v472 = vsub.s32 %v321, %v471
    %v473 = vrot.slane %v448, %v472
    %v474 = vlaneseq
    %v475 = vshrl.u32 %v474, 7
    %v476 = vsub.s32 %v321, %v475
    %v477 = vrot.slane %v451, %v476
    %v478 = vlaneseq
    %v479 = vshrl.u32 %v478, 7
    %v480 = vsub.s32 %v321, %v479
    %v481 = vrot.slane %v454, %v480
    %v482 = vlaneseq
    %v483 = vshrl.u32 %v482, 7
    %v484 = vsub.s32 %v321, %v483
    %v485 = vrot.slane %v457, %v484
    %v486 = vlaneseq
    %v487 = vshrl.u32 %v486, 7
    %v488 = vsub.s32 %v321, %v487
    %v489 = vrot.slane %v460, %v488
    %v490 = vlaneseq
    %v491 = vshrl.u32 %v490, 7
    %v492 = vsub.s32 %v321, %v491
    %v493 = vrot.slane %v463, %v492
    %v494 = vlaneseq
    %v495 = vshrl.u32 %v494, 7
    %v496 = vsub.s32 %v321, %v495
    %v497 = vrot.slane %v466, %v496
    %v498 = vlaneseq
    %v499 = vshrl.u32 %v498, 7
    %v500 = vsub.s32 %v321, %v499
    %v501 = vrot.slane %v469, %v500
    %v502 = vsel %vm354, %v477, %v473
    %v503 = vsel %vm356, %v481, %v502
    %v504 = vsel %vm358, %v485, %v503
    %v505 = vsel %vm360, %v489, %v504
    %v506 = vsel %vm362, %v493, %v505
    %v507 = vsel %vm364, %v497, %v506
    %v508 = vsel %vm366, %v501, %v507
    %v510 = vsel %vm369, %v508, 0.0
    %511 = vadd.xlane.f32.xlu0 %v510
    %v512 = vpop.xlane.xlu0 %511
    %v513 = vrcp.pop %v512
    %v515 = vlaneseq
    %v516 = vshrl.u32 %v515, 7
    %v517 = vsub.s32 0, %v516
    %v518 = vrot.slane %v513, %v517
    %v519 = vlaneseq
    %v520 = vshrl.u32 %v519, 7
    %v521 = vsub.s32 1, %v520
    %v522 = vrot.slane %v513, %v521
    %v523 = vlaneseq
    %v524 = vshrl.u32 %v523, 7
    %v525 = vsub.s32 2, %v524
    %v526 = vrot.slane %v513, %v525
    %v527 = vlaneseq
    %v528 = vshrl.u32 %v527, 7
    %v529 = vsub.s32 3, %v528
    %v530 = vrot.slane %v513, %v529
    %v531 = vlaneseq
    %v532 = vshrl.u32 %v531, 7
    %v533 = vsub.s32 4, %v532
    %v534 = vrot.slane %v513, %v533
    %v535 = vlaneseq
    %v536 = vshrl.u32 %v535, 7
    %v537 = vsub.s32 5, %v536
    %v538 = vrot.slane %v513, %v537
    %v539 = vlaneseq
    %v540 = vshrl.u32 %v539, 7
    %v541 = vsub.s32 6, %v540
    %v542 = vrot.slane %v513, %v541
    %v543 = vlaneseq
    %v544 = vshrl.u32 %v543, 7
    %v545 = vsub.s32 7, %v544
    %v546 = vrot.slane %v513, %v545
    %v555 = vmul.f32 %v423, %v518
    %v556 = vmul.f32 %v425, %v522
    %v557 = vmul.f32 %v427, %v526
    %v558 = vmul.f32 %v429, %v530
    %v559 = vmul.f32 %v431, %v534
    %v560 = vmul.f32 %v433, %v538
    %v561 = vmul.f32 %v435, %v542
    %v562 = vmul.f32 %v437, %v546
    %571 = vset.pattern.permute.xlu0 0
    %572 = vperm.xlu0 %571, %v555
    %v573 = vpop.permute.xlu0 %572
    %574 = vset.pattern.permute.xlu0 0
    %575 = vperm.xlu0 %574, %v556
    %v576 = vpop.permute.xlu0 %575
    %577 = vset.pattern.permute.xlu0 0
    %578 = vperm.xlu0 %577, %v557
    %v579 = vpop.permute.xlu0 %578
    %580 = vset.pattern.permute.xlu0 0
    %581 = vperm.xlu0 %580, %v558
    %v582 = vpop.permute.xlu0 %581
    %583 = vset.pattern.permute.xlu0 0
    %584 = vperm.xlu0 %583, %v559
    %v585 = vpop.permute.xlu0 %584
    %586 = vset.pattern.permute.xlu0 0
    %587 = vperm.xlu0 %586, %v560
    %v588 = vpop.permute.xlu0 %587
    %589 = vset.pattern.permute.xlu0 0
    %590 = vperm.xlu0 %589, %v561
    %v591 = vpop.permute.xlu0 %590
    %592 = vset.pattern.permute.xlu0 0
    %593 = vperm.xlu0 %592, %v562
    %v594 = vpop.permute.xlu0 %593
    %v595 = vlaneseq
    %v596 = vshrl.u32 %v595, 7
    %v597 = vsub.s32 %v321, %v596
    %v598 = vrot.slane %v573, %v597
    %v599 = vlaneseq
    %v600 = vshrl.u32 %v599, 7
    %v601 = vsub.s32 %v321, %v600
    %v602 = vrot.slane %v576, %v601
    %v603 = vlaneseq
    %v604 = vshrl.u32 %v603, 7
    %v605 = vsub.s32 %v321, %v604
    %v606 = vrot.slane %v579, %v605
    %v607 = vlaneseq
    %v608 = vshrl.u32 %v607, 7
    %v609 = vsub.s32 %v321, %v608
    %v610 = vrot.slane %v582, %v609
    %v611 = vlaneseq
    %v612 = vshrl.u32 %v611, 7
    %v613 = vsub.s32 %v321, %v612
    %v614 = vrot.slane %v585, %v613
    %v615 = vlaneseq
    %v616 = vshrl.u32 %v615, 7
    %v617 = vsub.s32 %v321, %v616
    %v618 = vrot.slane %v588, %v617
    %v619 = vlaneseq
    %v620 = vshrl.u32 %v619, 7
    %v621 = vsub.s32 %v321, %v620
    %v622 = vrot.slane %v591, %v621
    %v623 = vlaneseq
    %v624 = vshrl.u32 %v623, 7
    %v625 = vsub.s32 %v321, %v624
    %v626 = vrot.slane %v594, %v625
    %v627 = vsel %vm354, %v602, %v598
    %v628 = vsel %vm356, %v606, %v627
    %v629 = vsel %vm358, %v610, %v628
    %v630 = vsel %vm360, %v614, %v629
    %v631 = vsel %vm362, %v618, %v630
    %v632 = vsel %vm364, %v622, %v631
    %v633 = vsel %vm366, %v626, %v632
    %635 = vst.msk [vmem:[#allocation12] sm:$0xff] %vm369, %v633
    %v644 = vmul.f32 %v573, %v182
    %v645 = vmul.f32 %v576, %v183
    %v646 = vmul.f32 %v579, %v184
    %v647 = vmul.f32 %v582, %v185
    %v648 = vmul.f32 %v585, %v186
    %v649 = vmul.f32 %v588, %v187
    %v650 = vmul.f32 %v591, %v188
    %v651 = vmul.f32 %v594, %v189
    %v652 = vsel %vm108, %v644, 0.0
    %v653 = vrot.slane %v652, 4
    %v654 = vadd.f32 %v652, %v653
    %v655 = vrot.slane %v654, 2
    %v656 = vadd.f32 %v654, %v655
    %v657 = vrot.slane %v656, 1
    %v658 = vadd.f32 %v656, %v657
    %v659 = vsel %vm108, %v645, 0.0
    %v660 = vrot.slane %v659, 4
    %v661 = vadd.f32 %v659, %v660
    %v662 = vrot.slane %v661, 2
    %v663 = vadd.f32 %v661, %v662
    %v664 = vrot.slane %v663, 1
    %v665 = vadd.f32 %v663, %v664
    %v666 = vsel %vm108, %v646, 0.0
    %v667 = vrot.slane %v666, 4
    %v668 = vadd.f32 %v666, %v667
    %v669 = vrot.slane %v668, 2
    %v670 = vadd.f32 %v668, %v669
    %v671 = vrot.slane %v670, 1
    %v672 = vadd.f32 %v670, %v671
    %v673 = vsel %vm108, %v647, 0.0
    %v674 = vrot.slane %v673, 4
    %v675 = vadd.f32 %v673, %v674
    %v676 = vrot.slane %v675, 2
    %v677 = vadd.f32 %v675, %v676
    %v678 = vrot.slane %v677, 1
    %v679 = vadd.f32 %v677, %v678
    %v680 = vsel %vm108, %v648, 0.0
    %v681 = vrot.slane %v680, 4
    %v682 = vadd.f32 %v680, %v681
    %v683 = vrot.slane %v682, 2
    %v684 = vadd.f32 %v682, %v683
    %v685 = vrot.slane %v684, 1
    %v686 = vadd.f32 %v684, %v685
    %v687 = vsel %vm108, %v649, 0.0
    %v688 = vrot.slane %v687, 4
    %v689 = vadd.f32 %v687, %v688
    %v690 = vrot.slane %v689, 2
    %v691 = vadd.f32 %v689, %v690
    %v692 = vrot.slane %v691, 1
    %v693 = vadd.f32 %v691, %v692
    %v694 = vsel %vm108, %v650, 0.0
    %v695 = vrot.slane %v694, 4
    %v696 = vadd.f32 %v694, %v695
    %v697 = vrot.slane %v696, 2
    %v698 = vadd.f32 %v696, %v697
    %v699 = vrot.slane %v698, 1
    %v700 = vadd.f32 %v698, %v699
    %v701 = vsel %vm108, %v651, 0.0
    %v702 = vrot.slane %v701, 4
    %v703 = vadd.f32 %v701, %v702
    %v704 = vrot.slane %v703, 2
    %v705 = vadd.f32 %v703, %v704
    %v706 = vrot.slane %v705, 1
    %v707 = vadd.f32 %v705, %v706
    %v708 = vld [vmem:[#allocation8] sm:$0xff]
    %v709 = vld [vmem:[#allocation8 + $0x8] sm:$0xff]
    %v710 = vld [vmem:[#allocation8 + $0x10] sm:$0xff]
    %v711 = vld [vmem:[#allocation8 + $0x18] sm:$0xff]
    %v712 = vld [vmem:[#allocation10] sm:$0xff]
    %v713 = vld [vmem:[#allocation10 + $0x8] sm:$0xff]
    %v714 = vld [vmem:[#allocation10 + $0x10] sm:$0xff]
    %v715 = vld [vmem:[#allocation10 + $0x18] sm:$0xff]
    %v716 = vsel %vm108, %v179, 0
    %718 = vmatprep.subr.mxu0 0.0
    %719 = vmatpush1.msra.mxu0 %v712
    %720 = vmatprep.subr.mxu0 0.0
    %721 = vmatpush1.msra.mxu0 %v713
    %722 = vmatprep.subr.mxu0 0.0
    %723 = vmatpush1.msra.mxu0 %v714
    %724 = vmatprep.subr.mxu0 0.0
    %725 = vmatpush1.msra.mxu0 %v715
    %726 = vmatprep.subr.mxu0 0.0
    %727 = vmatpush1.msra.mxu0 0.0
    %728 = vmatprep.subr.mxu0 0.0
    %729 = vmatpush1.msra.mxu0 0.0
    %730 = vmatprep.subr.mxu0 0.0
    %731 = vmatpush1.msra.mxu0 0.0
    %732 = vmatprep.subr.mxu0 0.0
    %733 = vmatpush1.msra.mxu0 0.0
    %734 = vmatprep.subr.mxu0 0.0
    %735 = vmatpush1.msra.mxu0 0.0
    %736 = vmatprep.subr.mxu0 0.0
    %737 = vmatpush1.msra.mxu0 0.0
    %738 = vmatprep.subr.mxu0 0.0
    %739 = vmatpush1.msra.mxu0 0.0
    %740 = vmatprep.subr.mxu0 0.0
    %741 = vmatpush1.msra.mxu0 0.0
    %742 = vmatprep.subr.mxu0 0.0
    %743 = vmatpush1.msra.mxu0 0.0
    %744 = vmatprep.subr.mxu0 0.0
    %745 = vmatpush1.msra.mxu0 0.0
    %746 = vmatprep.subr.mxu0 0.0
    %747 = vmatpush1.msra.mxu0 0.0
    %748 = vmatprep.subr.mxu0 0.0
    %749 = vmatpush1.msra.mxu0 0.0
    %750 = vmatprep.subr.mxu0 0.0
    %751 = vmatpush1.msra.mxu0 0.0
    %752 = vmatprep.subr.mxu0 0.0
    %753 = vmatpush1.msra.mxu0 0.0
    %754 = vmatprep.subr.mxu0 0.0
    %755 = vmatpush1.msra.mxu0 0.0
    %756 = vmatprep.subr.mxu0 0.0
    %757 = vmatpush1.msra.mxu0 0.0
    %758 = vmatprep.subr.mxu0 0.0
    %759 = vmatpush1.msra.mxu0 0.0
    %760 = vmatprep.subr.mxu0 0.0
    %761 = vmatpush1.msra.mxu0 0.0
    %762 = vmatprep.subr.mxu0 0.0
    %763 = vmatpush1.msra.mxu0 0.0
    %764 = vmatprep.subr.mxu0 0.0
    %765 = vmatpush1.msra.mxu0 0.0
    %766 = vmatprep.subr.mxu0 0.0
    %767 = vmatpush1.msra.mxu0 0.0
    %768 = vmatprep.subr.mxu0 0.0
    %769 = vmatpush1.msra.mxu0 0.0
    %770 = vmatprep.subr.mxu0 0.0
    %771 = vmatpush1.msra.mxu0 0.0
    %772 = vmatprep.subr.mxu0 0.0
    %773 = vmatpush1.msra.mxu0 0.0
    %774 = vmatprep.subr.mxu0 0.0
    %775 = vmatpush1.msra.mxu0 0.0
    %776 = vmatprep.subr.mxu0 0.0
    %777 = vmatpush1.msra.mxu0 0.0
    %778 = vmatprep.subr.mxu0 0.0
    %779 = vmatpush1.msra.mxu0 0.0
    %780 = vmatprep.subr.mxu0 0.0
    %781 = vmatpush1.msra.mxu0 0.0
    %782 = vmatprep.mubr.f32.mxu0 0.0
    %783 = vmatmul.mubr.f32.gmra.mrb[0].mxu0 %v716
    %v784 = vpop.f32.mrb[0].mxu0
    %v785 = vadd.f32 0.0, %v784
    %v786 = vpop.f32.mrb[0].mxu0
    %787 = vdwg.mxu0
    %v796 = vsel %vm354, %v665, %v658
    %v797 = vsel %vm356, %v672, %v796
    %v798 = vsel %vm358, %v679, %v797
    %v799 = vsel %vm360, %v686, %v798
    %v800 = vsel %vm362, %v693, %v799
    %v801 = vsel %vm364, %v700, %v800
    %v802 = vsel %vm366, %v707, %v801
    %v803 = vsel %vm108, %v802, 0
    %805 = vmatprep.subr.mxu0 0.0
    %806 = vmatpush1.msra.mxu0 %v708
    %807 = vmatprep.subr.mxu0 0.0
    %808 = vmatpush1.msra.mxu0 %v709
    %809 = vmatprep.subr.mxu0 0.0
    %810 = vmatpush1.msra.mxu0 %v710
    %811 = vmatprep.subr.mxu0 0.0
    %812 = vmatpush1.msra.mxu0 %v711
    %813 = vmatprep.subr.mxu0 0.0
    %814 = vmatpush1.msra.mxu0 0.0
    %815 = vmatprep.subr.mxu0 0.0
    %816 = vmatpush1.msra.mxu0 0.0
    %817 = vmatprep.subr.mxu0 0.0
    %818 = vmatpush1.msra.mxu0 0.0
    %819 = vmatprep.subr.mxu0 0.0
    %820 = vmatpush1.msra.mxu0 0.0
    %821 = vmatprep.subr.mxu0 0.0
    %822 = vmatpush1.msra.mxu0 0.0
    %823 = vmatprep.subr.mxu0 0.0
    %824 = vmatpush1.msra.mxu0 0.0
    %825 = vmatprep.subr.mxu0 0.0
    %826 = vmatpush1.msra.mxu0 0.0
    %827 = vmatprep.subr.mxu0 0.0
    %828 = vmatpush1.msra.mxu0 0.0
    %829 = vmatprep.subr.mxu0 0.0
    %830 = vmatpush1.msra.mxu0 0.0
    %831 = vmatprep.subr.mxu0 0.0
    %832 = vmatpush1.msra.mxu0 0.0
    %833 = vmatprep.subr.mxu0 0.0
    %834 = vmatpush1.msra.mxu0 0.0
    %835 = vmatprep.subr.mxu0 0.0
    %836 = vmatpush1.msra.mxu0 0.0
    %837 = vmatprep.subr.mxu0 0.0
    %838 = vmatpush1.msra.mxu0 0.0
    %839 = vmatprep.subr.mxu0 0.0
    %840 = vmatpush1.msra.mxu0 0.0
    %841 = vmatprep.subr.mxu0 0.0
    %842 = vmatpush1.msra.mxu0 0.0
    %843 = vmatprep.subr.mxu0 0.0
    %844 = vmatpush1.msra.mxu0 0.0
    %845 = vmatprep.subr.mxu0 0.0
    %846 = vmatpush1.msra.mxu0 0.0
    %847 = vmatprep.subr.mxu0 0.0
    %848 = vmatpush1.msra.mxu0 0.0
    %849 = vmatprep.subr.mxu0 0.0
    %850 = vmatpush1.msra.mxu0 0.0
    %851 = vmatprep.subr.mxu0 0.0
    %852 = vmatpush1.msra.mxu0 0.0
    %853 = vmatprep.subr.mxu0 0.0
    %854 = vmatpush1.msra.mxu0 0.0
    %855 = vmatprep.subr.mxu0 0.0
    %856 = vmatpush1.msra.mxu0 0.0
    %857 = vmatprep.subr.mxu0 0.0
    %858 = vmatpush1.msra.mxu0 0.0
    %859 = vmatprep.subr.mxu0 0.0
    %860 = vmatpush1.msra.mxu0 0.0
    %861 = vmatprep.subr.mxu0 0.0
    %862 = vmatpush1.msra.mxu0 0.0
    %863 = vmatprep.subr.mxu0 0.0
    %864 = vmatpush1.msra.mxu0 0.0
    %865 = vmatprep.subr.mxu0 0.0
    %866 = vmatpush1.msra.mxu0 0.0
    %867 = vmatprep.subr.mxu0 0.0
    %868 = vmatpush1.msra.mxu0 0.0
    %869 = vmatprep.mubr.f32.mxu0 0.0
    %870 = vmatmul.mubr.f32.gmra.mrb[0].mxu0 %v803
    %v871 = vpop.f32.mrb[0].mxu0
    %v872 = vadd.f32 %v785, %v871
    %v873 = vpop.f32.mrb[0].mxu0
    %874 = vdwg.mxu0
    %v875 = vld [vmem:[%s6] sm:$0x1]
    %v877 = vlaneseq
    %v878 = vshrl.u32 %v877, 7
    %v879 = vsub.s32 0, %v878
    %v880 = vrot.slane %v875, %v879
    %v882 = vadd.f32 %v872, %v880
    %v883 = vtanh.pop %v882
    %884 = vst.msk [vmem:[#allocation11] sm:$0xff] %vm108, %v883
    // Predicated region
    $region50: #{tpu_custom_call.1} parent=1 // pred_check
      _
    $region51: #{tpu_custom_call.1} parent=1 // pred_check_branch
      %886 = sbr.rel (0) target = $region53
    $region52: #{tpu_custom_call.1} parent=1 // pred_region
      %s888 = ssub.s32 128, 128
      %889 = vsyncadd [#allocation4], %s888
      %s891 = sshll.u32 [#allocation11], 4
      %s892 = int_to_ptr.vmem [resolvable:$true] %s891
      %894 = dma.vmem_to_hbm [thread:$0]  %s892, 128, %s7, [#allocation4]
    $region53: #{tpu_custom_call.1} parent=1 // pred_fallthru
      _
    // Predicated region
    $region54: #{tpu_custom_call.1} parent=1 // pred_check
      _
    $region55: #{tpu_custom_call.1} parent=1 // pred_check_branch
      %896 = sbr.rel (0) target = $region57
    $region56: #{tpu_custom_call.1} parent=1 // pred_region
      %s898 = ssub.s32 128, 128
      %899 = vsyncadd [#allocation13], %s898
      %s901 = sshll.u32 [#allocation12], 4
      %s902 = int_to_ptr.vmem [resolvable:$true] %s901
      %904 = dma.vmem_to_hbm [thread:$0]  %s902, 128, %s8, [#allocation13]
    $region57: #{tpu_custom_call.1} parent=1 // pred_fallthru
      _
    // Predicated region
    $region58: #{tpu_custom_call.1} parent=1 // pred_check
      _
    $region59: #{tpu_custom_call.1} parent=1 // pred_check_branch
      %906 = sbr.rel (0) target = $region61
    $region60: #{tpu_custom_call.1} parent=1 // pred_region
      %907 = dma.done [#allocation4], 128
    $region61: #{tpu_custom_call.1} parent=1 // pred_fallthru
      _
    // Predicated region
    $region62: #{tpu_custom_call.1} parent=1 // pred_check
      _
    $region63: #{tpu_custom_call.1} parent=1 // pred_check_branch
      %909 = sbr.rel (0) target = $region65
    $region64: #{tpu_custom_call.1} parent=1 // pred_region
      %910 = dma.done [#allocation13], 128
    $region65: #{tpu_custom_call.1} parent=1 // pred_fallthru
      _
    %911 = vsyncpa [#allocation3], 1
    %912 = vsyncpa [#allocation6], 1
    %913 = vsyncpa [#allocation9], 1
    %914 = vsyncpa [#allocation4], 1
    %915 = vsyncpa [#allocation13], 1

</llo_original>
